<compile_context>
chip_gen: v6e
topology: v6e:2x2x1
jax: 0.10.0
libtpu: 0.0.40
codegen_flags: <defaults>
</compile_context>

<pallas_src>
import jax
import jax.numpy as jnp
from jax import lax
from jax.experimental import pallas as pl
from jax.experimental.pallas import tpu as pltpu

LN_EPS = 1e-12


def _pe_layernorm_kernel(x_ref, pos_ref, w_ref, b_ref, o_ref):
    # x_ref:   (TB, TS, D)  tile of the input
    # pos_ref: (TS, D)      positional embeddings for this row tile
    # w_ref:   (1, D)       LayerNorm weight
    # b_ref:   (1, D)       LayerNorm bias
    # o_ref:   (TB, TS, D)  output tile
    x = x_ref[...].astype(jnp.float32)
    pos = pos_ref[...].astype(jnp.float32)

    y = x + pos[None, :, :]                                   # broadcast over batch
    mean = jnp.mean(y, axis=-1, keepdims=True)                 # (TB, TS, 1)
    y = y - mean                                               # reuse y (centered)
    var = jnp.mean(y * y, axis=-1, keepdims=True)              # biased, TF-style
    y = y * lax.rsqrt(var + LN_EPS)                            # EUP rsqrt, no divide

    w = w_ref[...].astype(jnp.float32)[None, :, :]             # (1, 1, D)
    b = b_ref[...].astype(jnp.float32)[None, :, :]
    # TODO(synk): dropout is identity here (eval-mode semantics); training-mode
    # dropout would need pltpu.prng_seed + pltpu.stateful_bernoulli.
    o_ref[...] = (y * w + b).astype(o_ref.dtype)


def _sublane_packing(itemsize: int) -> int:
    # f32 -> 8, bf16/f16 -> 16, int8/fp8 -> 32 rows per native sublane tile.
    return 8 * max(1, 4 // max(1, itemsize))


def positional_encoding_forward(x, pos_table, ln_weight, ln_bias,
                                *, block_bytes=4 * 1024 * 1024,
                                donate_x=False):
    """x: (B, S, D); pos_table: (max_len, D); ln_weight/ln_bias: (D,)."""
    B, S, D = x.shape
    max_len = pos_table.shape[0]
    assert S <= max_len, f"sequence length {S} exceeds max_len {max_len}"

    w2d = ln_weight.reshape(1, D)
    b2d = ln_bias.reshape(1, D)

    itemsize = jnp.dtype(x.dtype).itemsize
    packing = _sublane_packing(itemsize)

    # --- choose (tb, ts): big lane-dense tiles along S, D always whole -------
    rows_target = max(packing, block_bytes // max(1, D * itemsize))
    if S <= rows_target:
        ts = S                                    # full extent (satisfies (8,128) rule)
        tb = max(1, min(B, rows_target // max(1, S)))
    else:
        ts = max(packing, (rows_target // packing) * packing)
        tb = 1

    # --- account for f32 intermediates in the live-VMEM working set ----------
    def working_set(tb_, ts_):
        blk = tb_ * ts_ * D
        io = 2 * blk * itemsize          # x tile, double-buffered
        io += 2 * blk * itemsize         # out tile, double-buffered
        io += 2 * ts_ * D * itemsize     # pos tile, double-buffered
        f32_tmps = 3 * blk * 4           # y / products / output in f32
        return io + f32_tmps

    VMEM_BUDGET = 40 * 1024 * 1024       # safe on v7x (64 MiB physical VMEM)
    while working_set(tb, ts) > VMEM_BUDGET:
        if tb > 1:
            tb = max(1, tb // 2)
        elif ts > packing and ts >= 2 * packing:
            ts = max(packing, ((ts // 2) // packing) * packing)
        else:
            break

    grid = (pl.cdiv(S, ts), pl.cdiv(B, tb))       # row tiles OUTER, batch INNER

    # Normally pass the full table (no host-side slice); only if the padded row
    # extent of the last tile would run past max_len do we fall back to a slice.
    pos_operand = pos_table if pl.cdiv(S, ts) * ts <= max_len else pos_table[:S]

    vmem_limit = int(min(48 * 1024 * 1024,
                         max(16 * 1024 * 1024, working_set(tb, ts) + 8 * 1024 * 1024)))

    return pl.pallas_call(
        _pe_layernorm_kernel,
        out_shape=jax.ShapeDtypeStruct((B, S, D), x.dtype),
        grid_spec=pltpu.PrefetchScalarGridSpec(
            num_scalar_prefetch=0,
            grid=grid,
            in_specs=[
                pl.BlockSpec((tb, ts, D), lambda ti, bi: (bi, ti, 0)),  # x tile
                pl.BlockSpec((ts, D), lambda ti, bi: (ti, 0)),          # pos rows (resident across bi)
                pl.BlockSpec((1, D), lambda ti, bi: (0, 0)),            # LN weight
                pl.BlockSpec((1, D), lambda ti, bi: (0, 0)),            # LN bias
            ],
            out_specs=pl.BlockSpec((tb, ts, D), lambda ti, bi: (bi, ti, 0)),
        ),
        compiler_params=pltpu.CompilerParams(
            dimension_semantics=("parallel", "parallel"),
            vmem_limit_bytes=vmem_limit,
        ),
        input_output_aliases=({0: 0} if donate_x else {}),
    )(x, pos_operand, w2d, b2d)


if __name__ == "__main__":
    # Small shapes consistent with the module: batch=2, seq=8, d_model=32.
    B, S, D = 2, 8, 32
    MAX_LEN = 64  # stand-in for max_len=5000 (only rows [0, S) are used)

    key = jax.random.PRNGKey(0)
    kx, kpos = jax.random.split(key)

    x = jax.random.normal(kx, (B, S, D), dtype=jnp.float32)
    # Deterministic synthetic Embedding(max_len, d_model) weight (PyTorch inits N(0,1)).
    pos_table = jax.random.normal(kpos, (MAX_LEN, D), dtype=jnp.float32)
    # LayerNorm params as in __init__: ones / zeros.
    ln_weight = jnp.ones((D,), dtype=jnp.float32)
    ln_bias = jnp.zeros((D,), dtype=jnp.float32)

    out = positional_encoding_forward(x, pos_table, ln_weight, ln_bias)
    out = jax.block_until_ready(out)

    # Sanity check against a pure-JAX reference.
    y_ref = x + pos_table[:S][None, :, :]
    mean = jnp.mean(y_ref, axis=-1, keepdims=True)
    var = jnp.mean((y_ref - mean) ** 2, axis=-1, keepdims=True)
    y_ref = (y_ref - mean) / jnp.sqrt(var + LN_EPS)
    y_ref = ln_weight * y_ref + ln_bias
    assert jnp.allclose(out, y_ref, atol=1e-5, rtol=1e-5), "mismatch vs reference"

    print("KERNEL_OK")
</pallas_src>

<mosaic_0001>
module attributes {stable_mosaic.version = 11 : i64} {
  func.func @_pe_layernorm_kernel(%arg0: i32, %arg1: i32, %arg2: memref<2x8x32xf32, #tpu.memory_space<vmem>>, %arg3: memref<8x32xf32, #tpu.memory_space<vmem>>, %arg4: memref<1x32xf32, #tpu.memory_space<vmem>>, %arg5: memref<1x32xf32, #tpu.memory_space<vmem>>, %arg6: memref<2x8x32xf32, #tpu.memory_space<vmem>>) attributes {dimension_semantics = [#tpu.dimension_semantics<parallel>, #tpu.dimension_semantics<parallel>], iteration_bounds = array<i64: 1, 1>, scalar_prefetch = 0 : i64, scratch_operands = 0 : i64, tpu.core_type = #tpu.core_type<tc>, window_params = [{transform_indices = @transform_0, window_bounds = array<i64: 2, 8, 32>}, {transform_indices = @transform_1, window_bounds = array<i64: 8, 32>}, {pipeline_mode = #tpu.pipeline_mode<synchronous>, transform_indices = @transform_2, window_bounds = array<i64: 1, 32>}, {pipeline_mode = #tpu.pipeline_mode<synchronous>, transform_indices = @transform_3, window_bounds = array<i64: 1, 32>}, {transform_indices = @transform_4, window_bounds = array<i64: 2, 8, 32>}]} {
    %c0 = arith.constant 0 : index
    %c0_0 = arith.constant 0 : index
    %c0_1 = arith.constant 0 : index
    %0 = vector.load %arg2[%c0, %c0_0, %c0_1] : memref<2x8x32xf32, #tpu.memory_space<vmem>>, vector<2x8x32xf32>
    %c0_2 = arith.constant 0 : index
    %c0_3 = arith.constant 0 : index
    %1 = vector.load %arg3[%c0_2, %c0_3] : memref<8x32xf32, #tpu.memory_space<vmem>>, vector<8x32xf32>
    %2 = vector.shape_cast %1 : vector<8x32xf32> to vector<1x8x32xf32>
    %3 = vector.broadcast %2 : vector<1x8x32xf32> to vector<2x8x32xf32>
    %4 = arith.addf %0, %3 : vector<2x8x32xf32>
    %cst = arith.constant dense<0.000000e+00> : vector<2x8xf32>
    %5 = vector.multi_reduction <add>, %4, %cst [2] : vector<2x8x32xf32> to vector<2x8xf32>
    %6 = vector.shape_cast %5 : vector<2x8xf32> to vector<2x8x1xf32>
    %cst_4 = arith.constant 3.200000e+01 : f32
    %7 = vector.broadcast %cst_4 : f32 to vector<2x8x1xf32>
    %8 = arith.divf %6, %7 : vector<2x8x1xf32>
    %9 = vector.broadcast %8 : vector<2x8x1xf32> to vector<2x8x32xf32>
    %10 = arith.subf %4, %9 : vector<2x8x32xf32>
    %11 = arith.mulf %10, %10 : vector<2x8x32xf32>
    %cst_5 = arith.constant dense<0.000000e+00> : vector<2x8xf32>
    %12 = vector.multi_reduction <add>, %11, %cst_5 [2] : vector<2x8x32xf32> to vector<2x8xf32>
    %13 = vector.shape_cast %12 : vector<2x8xf32> to vector<2x8x1xf32>
    %cst_6 = arith.constant 3.200000e+01 : f32
    %14 = vector.broadcast %cst_6 : f32 to vector<2x8x1xf32>
    %15 = arith.divf %13, %14 : vector<2x8x1xf32>
    %cst_7 = arith.constant 9.99999996E-13 : f32
    %16 = vector.broadcast %cst_7 : f32 to vector<2x8x1xf32>
    %17 = arith.addf %15, %16 : vector<2x8x1xf32>
    %18 = math.rsqrt %17 : vector<2x8x1xf32>
    %19 = vector.broadcast %18 : vector<2x8x1xf32> to vector<2x8x32xf32>
    %20 = arith.mulf %10, %19 : vector<2x8x32xf32>
    %c0_8 = arith.constant 0 : index
    %c0_9 = arith.constant 0 : index
    %21 = vector.load %arg4[%c0_8, %c0_9] : memref<1x32xf32, #tpu.memory_space<vmem>>, vector<1x32xf32>
    %22 = vector.shape_cast %21 : vector<1x32xf32> to vector<1x1x32xf32>
    %c0_10 = arith.constant 0 : index
    %c0_11 = arith.constant 0 : index
    %23 = vector.load %arg5[%c0_10, %c0_11] : memref<1x32xf32, #tpu.memory_space<vmem>>, vector<1x32xf32>
    %24 = vector.shape_cast %23 : vector<1x32xf32> to vector<1x1x32xf32>
    %25 = vector.broadcast %22 : vector<1x1x32xf32> to vector<2x8x32xf32>
    %26 = arith.mulf %20, %25 : vector<2x8x32xf32>
    %27 = vector.broadcast %24 : vector<1x1x32xf32> to vector<2x8x32xf32>
    %28 = arith.addf %26, %27 : vector<2x8x32xf32>
    %c0_12 = arith.constant 0 : index
    %c0_13 = arith.constant 0 : index
    %c0_14 = arith.constant 0 : index
    %29 = vector.load %arg6[%c0_12, %c0_13, %c0_14] : memref<2x8x32xf32, #tpu.memory_space<vmem>>, vector<2x8x32xf32>
    tpu.vector_store %arg6[%c0_12, %c0_13, %c0_14], %28 {strides = array<i32>} : memref<2x8x32xf32, #tpu.memory_space<vmem>>, vector<2x8x32xf32>,
    return
  }
  func.func @transform_0(%arg0: i32, %arg1: i32) -> (i32, i32, i32) {
    %c0_i32 = arith.constant 0 : i32
    %c0_i32_0 = arith.constant 0 : i32
    return %arg1, %arg0, %c0_i32 : i32, i32, i32
  }
  func.func @transform_1(%arg0: i32, %arg1: i32) -> (i32, i32) {
    %c0_i32 = arith.constant 0 : i32
    %c0_i32_0 = arith.constant 0 : i32
    return %arg0, %c0_i32 : i32, i32
  }
  func.func @transform_2(%arg0: i32, %arg1: i32) -> (i32, i32) {
    %c0_i32 = arith.constant 0 : i32
    %c0_i32_0 = arith.constant 0 : i32
    %c0_i32_1 = arith.constant 0 : i32
    return %c0_i32, %c0_i32_0 : i32, i32
  }
  func.func @transform_3(%arg0: i32, %arg1: i32) -> (i32, i32) {
    %c0_i32 = arith.constant 0 : i32
    %c0_i32_0 = arith.constant 0 : i32
    %c0_i32_1 = arith.constant 0 : i32
    return %c0_i32, %c0_i32_0 : i32, i32
  }
  func.func @transform_4(%arg0: i32, %arg1: i32) -> (i32, i32, i32) {
    %c0_i32 = arith.constant 0 : i32
    %c0_i32_0 = arith.constant 0 : i32
    return %arg1, %arg0, %c0_i32 : i32, i32, i32
  }
}

</mosaic_0001>

<llo_original>
// kernel: tpu_custom_call.1
$region0: #{tpu_custom_call.1}
  #allocation0 [shape = 'u32[]', space=smem, size = 0x4, offset = 0x4, fixed_abs, tag = 'smem constant byte address 0x4 - core index']
  #allocation1 [shape = 'u32[144,128]{1,0:T(1,128)}', space=vmem, size = 0x12000, scoped, tag = 'internal scratch']
  %s0 = inlined_call_operand.vmem [shape: f32[2,8,32], index: 0, kind: input, shape index: {}]
  %s1 = inlined_call_operand.vmem [shape: f32[64,32], index: 1, kind: input, shape index: {}]
  %s2 = inlined_call_operand.vmem [shape: f32[1,32], index: 2, kind: input, shape index: {}]
  %s3 = inlined_call_operand.vmem [shape: f32[1,32], index: 3, kind: input, shape index: {}]
  %s4 = inlined_call_operand.hbm [shape: f32[2,8,32], index: 4, kind: output, shape index: {}]
  %s5 = sld [smem:[#allocation0]]
  $region26: #{tpu_custom_call.1} parent=0
    _
  %s7 = ssub.s32 1, %s5
  %s8 = scalar_select 0, %s7, %s5
  $region1: #{tpu_custom_call.1} parent=0
    #allocation2 [shape = 'u8[8192]{0}', space=vmem, size = 0x2000, scoped, tag = 'output window, operand 0, single buffered']
    #allocation3 [shape = 's32[1]{0}', space=sflag, size = 0x4, scoped, tag = 'scoped memory for tpu_custom_call.1']
    %9 = vsyncpa [#allocation3], 0
    // Predicated region
    $region2: #{tpu_custom_call.1} parent=1 // pred_check
      _
    $region3: #{tpu_custom_call.1} parent=1 // pred_check_branch
      %11 = sbr.rel (0) target = $region5
    $region4: #{tpu_custom_call.1} parent=1 // pred_region
      _
    $region5: #{tpu_custom_call.1} parent=1 // pred_fallthru
      _
    // Predicated region
    $region6: #{tpu_custom_call.1} parent=1 // pred_check
      _
    $region7: #{tpu_custom_call.1} parent=1 // pred_check_branch
      %13 = sbr.rel (0) target = $region9
    $region8: #{tpu_custom_call.1} parent=1 // pred_region
      _
    $region9: #{tpu_custom_call.1} parent=1 // pred_fallthru
      _
    // Predicated region
    $region10: #{tpu_custom_call.1} parent=1 // pred_check
      _
    $region11: #{tpu_custom_call.1} parent=1 // pred_check_branch
      %15 = sbr.rel (0) target = $region13
    $region12: #{tpu_custom_call.1} parent=1 // pred_region
      _
    $region13: #{tpu_custom_call.1} parent=1 // pred_fallthru
      _
    // Predicated region
    $region14: #{tpu_custom_call.1} parent=1 // pred_check
      _
    $region15: #{tpu_custom_call.1} parent=1 // pred_check_branch
      %17 = sbr.rel (0) target = $region17
    $region16: #{tpu_custom_call.1} parent=1 // pred_region
      _
    $region17: #{tpu_custom_call.1} parent=1 // pred_fallthru
      _
    %v18 = vld [vmem:[%s0] sm:$0xff]
    %v19 = vld [vmem:[%s0 + $0x8] sm:$0xff]
    %v20 = vld [vmem:[%s1] sm:$0xff]
    %v21 = vadd.f32 %v18, %v20
    %v22 = vadd.f32 %v19, %v20
    %vm23 = vcmask 261120
    %v24 = vsel %vm23, %v21, 0.0
    %25 = vadd.xlane.f32.xlu0 %v24
    %v26 = vpop.xlane.xlu0 %25
    %v27 = vsel %vm23, %v22, 0.0
    %28 = vadd.xlane.f32.xlu0 %v27
    %v29 = vpop.xlane.xlu0 %28
    %v30 = vrcp.pop 32.0
    %v31 = vmul.f32 %v26, %v30
    %v32 = vmul.f32 %v29, %v30
    %v33 = vsub.f32 %v21, %v31
    %v34 = vsub.f32 %v22, %v32
    %v35 = vmul.f32 %v33, %v33
    %v36 = vmul.f32 %v34, %v34
    %v37 = vsel %vm23, %v35, 0.0
    %38 = vadd.xlane.f32.xlu0 %v37
    %v39 = vpop.xlane.xlu0 %38
    %v40 = vsel %vm23, %v36, 0.0
    %41 = vadd.xlane.f32.xlu0 %v40
    %v42 = vpop.xlane.xlu0 %41
    %v43 = vmul.f32 %v39, %v30
    %v44 = vmul.f32 %v42, %v30
    %v45 = vadd.f32 %v43, 1e-12
    %v46 = vadd.f32 %v44, 1e-12
    %v47 = vrsqrt.pop %v45
    %v48 = vrsqrt.pop %v46
    %v49 = vmul.f32 %v33, %v47
    %v50 = vmul.f32 %v34, %v48
    %v51 = vld [vmem:[%s2] sm:$0x1]
    %v52 = vld [vmem:[%s3] sm:$0x1]
    %v54 = vlaneseq
    %v55 = vshrl.u32 %v54, 7
    %v56 = vsub.s32 0, %v55
    %v57 = vrot.slane %v51, %v56
    %v59 = vmul.f32 %v49, %v57
    %v60 = vmul.f32 %v50, %v57
    %v62 = vlaneseq
    %v63 = vshrl.u32 %v62, 7
    %v64 = vsub.s32 0, %v63
    %v65 = vrot.slane %v52, %v64
    %v67 = vadd.f32 %v59, %v65
    %v68 = vadd.f32 %v60, %v65
    %69 = vst.msk [vmem:[#allocation2] sm:$0xff] %vm23, %v67
    %70 = vst.msk [vmem:[#allocation2 + $0x8] sm:$0xff] %vm23, %v68
    // Predicated region
    $region18: #{tpu_custom_call.1} parent=1 // pred_check
      _
    $region19: #{tpu_custom_call.1} parent=1 // pred_check_branch
      %72 = sbr.rel (0) target = $region21
    $region20: #{tpu_custom_call.1} parent=1 // pred_region
      %s74 = ssub.s32 256, 256
      %75 = vsyncadd [#allocation3], %s74
      %s76 = sshll.u32 [#allocation2], 4
      %s77 = int_to_ptr.vmem [resolvable:$true] %s76
      %82 = dma.vmem_to_hbm [thread:$0]  %s77, 256, %s4, [#allocation3], 128, 128, 8
    $region21: #{tpu_custom_call.1} parent=1 // pred_fallthru
      _
    // Predicated region
    $region22: #{tpu_custom_call.1} parent=1 // pred_check
      _
    $region23: #{tpu_custom_call.1} parent=1 // pred_check_branch
      %84 = sbr.rel (0) target = $region25
    $region24: #{tpu_custom_call.1} parent=1 // pred_region
      %85 = dma.done [#allocation3], 256
    $region25: #{tpu_custom_call.1} parent=1 // pred_fallthru
      _
    %86 = vsyncpa [#allocation3], 1

</llo_original>
